<compile_context>
chip_gen: v6e
topology: v6e:2x2x1
jax: 0.10.0
libtpu: 0.0.40
codegen_flags: <defaults>
</compile_context>

<pallas_src>
import math

import jax
import jax.numpy as jnp
from jax.experimental import pallas as pl
from jax.experimental.pallas import tpu as pltpu

_INV_SQRT2 = 1.0 / math.sqrt(2.0)


def _gelu_ref(x):
    """Plain-JAX exact GELU (f32 internals), used for tiny / pathological shapes."""
    xf = x.astype(jnp.float32)
    y = 0.5 * xf * (1.0 + jax.lax.erf(xf * _INV_SQRT2))
    return y.astype(x.dtype)


def _gelu_kernel(x_ref, o_ref):
    # Exact GELU: 0.5 * x * (1 + erf(x / sqrt(2))), computed in f32 (matches
    # torch's opmath for erf-GELU).
    # TODO(synk): on v7x this is likely VALU-bound for bf16 inputs; evaluating
    # the erf polynomial in bf16 there would be ~1.5-2x but changes numerics,
    # so we keep f32 internals for parity with the PyTorch module.
    xf = x_ref[...].astype(jnp.float32)
    o_ref[...] = (0.5 * xf * (1.0 + jax.lax.erf(xf * _INV_SQRT2))).astype(o_ref.dtype)


def _round_up(a, b):
    return ((a + b - 1) // b) * b


def _vmem_config():
    """(target_tile_bytes, vmem_limit_bytes) tuned per TPU generation.

    v5e/v6e have 128 MiB physical VMEM -> ~6 MiB tiles, 48 MiB scoped limit.
    v7x has only 64 MiB physical (32 MiB default scoped) -> ~4 MiB tiles,
    28 MiB limit.  Unknown chips use the conservative pair.
    """
    try:
        cap = getattr(pltpu.get_tpu_info(), "vmem_capacity_bytes", 0)
    except Exception:
        cap = 0
    if cap >= (96 << 20):
        return 6 << 20, 48 << 20
    return 4 << 20, 28 << 20


def gelu_pallas(x, *, target_tile_bytes=None, vmem_limit_bytes=None,
                min_pallas_elems=1 << 16):
    N = x.size
    if N < min_pallas_elems:
        # pallas_call launch + pipeline-prime overhead dominates tiny activations.
        return _gelu_ref(x)

    cfg_tile, cfg_vmem = _vmem_config()
    if target_tile_bytes is None:
        target_tile_bytes = cfg_tile
    if vmem_limit_bytes is None:
        vmem_limit_bytes = cfg_vmem

    itemsize = jnp.dtype(x.dtype).itemsize
    # Sublane packing: 8 rows/vreg for 32-bit, 16 for bf16, 32 for int8/fp8.
    sub = max(8, 32 // itemsize)

    # Choose a lane-dense 2-D view; GELU is elementwise so any contiguous
    # reshape is metadata-only (no HBM copy).  Prefer the widest lane that
    # still leaves enough rows for >= 4 grid steps; otherwise the widest
    # divisor (any lane >= 128 is still layout-legal).
    lane = None
    for cand in (4096, 2048, 1024, 512, 256, 128):
        if N % cand == 0:
            if lane is None:
                lane = cand  # widest divisor as fallback
            if cand >= 512 and (N // cand) >= 4 * sub:
                lane = cand
                break

    if lane is not None:
        x2 = x.reshape(-1, lane)
    else:
        # Total size not a multiple of 128: fall back to the (leading, last-dim)
        # view (block last dim == full C is always layout-legal).  Guard VMEM:
        # even a minimum sub-row tile must fit the per-buffer budget.
        if x.ndim >= 2 and x.shape[-1] * sub * itemsize <= target_tile_bytes:
            x2 = x.reshape(-1, x.shape[-1])
        else:
            # TODO(synk): pathological shapes (1-D & not /128, or a huge ragged
            # last dim) use the plain-JAX path instead of a column-tiled grid.
            return _gelu_ref(x)

    R, C = x2.shape

    # Balanced blocks: aim for ~target_tile_bytes per buffer, but never fewer
    # than 4 steps (megacore sharding + DMA/compute overlap), and never more
    # blocks than there are sublane-aligned row groups.
    total_bytes = R * C * itemsize
    nb = max(1, total_bytes // target_tile_bytes)
    nb = max(nb, 4)
    nb = min(nb, pl.cdiv(R, sub))
    tr = _round_up(pl.cdiv(R, nb), sub)
    if tr >= R:
        tr = R  # single full block (always layout-legal)

    grid = (pl.cdiv(R, tr),)  # ragged last block handled by Pallas; no padding

    out = pl.pallas_call(
        _gelu_kernel,
        out_shape=jax.ShapeDtypeStruct((R, C), x.dtype),
        grid_spec=pltpu.PrefetchScalarGridSpec(
            num_scalar_prefetch=0,
            grid=grid,
            in_specs=[pl.BlockSpec((tr, C), lambda i: (i, 0))],
            out_specs=pl.BlockSpec((tr, C), lambda i: (i, 0)),
        ),
        compiler_params=pltpu.CompilerParams(
            dimension_semantics=("parallel",),
            vmem_limit_bytes=vmem_limit_bytes,
        ),
    )(x2)

    return out.reshape(x.shape)


class GELUActivation:
    """JAX/Pallas mirror of the PyTorch GELUActivation module (no params)."""

    def __init__(self, use_gelu_python: bool = False):
        # Both branches of the torch module compute the identical erf-based GELU.
        self.act = gelu_pallas

    def __call__(self, x):
        return self.act(x)


if __name__ == "__main__":
    key = jax.random.PRNGKey(0)
    module = GELUActivation()

    # (1) Small BERT-like activation (batch=2, seq=8, hidden=32) -> fast path.
    x_small = jax.random.normal(key, (2, 8, 32), dtype=jnp.float32)
    y_small = jax.block_until_ready(module(x_small))

    # (2) Larger f32 activation exercising the Pallas path (4 balanced blocks).
    x_big = jax.random.normal(key, (2, 128, 512), dtype=jnp.float32)
    y_big = jax.block_until_ready(module(x_big))

    # (3) bf16 activation: exercises dtype-aware sublane rounding (sub=16) and
    #     the narrower-lane fallback when the widest lane leaves too few rows.
    x_bf16 = jax.random.normal(key, (2, 128, 512), dtype=jnp.bfloat16)
    y_bf16 = jax.block_until_ready(module(x_bf16))

    checks = (
        (x_small, y_small, 1e-5),
        (x_big, y_big, 1e-5),
        (x_bf16, y_bf16, 1e-2),
    )
    for x, y, tol in checks:
        assert y.shape == x.shape and y.dtype == x.dtype
        ref = _gelu_ref(x).astype(jnp.float32)
        err = jnp.max(jnp.abs(y.astype(jnp.float32) - ref))
        assert err < tol, f"max err {err} >= {tol}"

    print("KERNEL_OK")
</pallas_src>

<mosaic_0001>
module attributes {stable_mosaic.version = 11 : i64} {
  func.func @_gelu_kernel(%arg0: i32, %arg1: memref<8x4096xf32, #tpu.memory_space<vmem>>, %arg2: memref<8x4096xf32, #tpu.memory_space<vmem>>) attributes {dimension_semantics = [#tpu.dimension_semantics<parallel>], iteration_bounds = array<i64: 4>, scalar_prefetch = 0 : i64, scratch_operands = 0 : i64, tpu.core_type = #tpu.core_type<tc>, window_params = [{transform_indices = @transform_0, window_bounds = array<i64: 8, 4096>}, {transform_indices = @transform_1, window_bounds = array<i64: 8, 4096>}]} {
    %c0 = arith.constant 0 : index
    %c0_0 = arith.constant 0 : index
    %0 = vector.load %arg1[%c0, %c0_0] : memref<8x4096xf32, #tpu.memory_space<vmem>>, vector<8x4096xf32>
    %cst = arith.constant 5.000000e-01 : f32
    %1 = vector.broadcast %cst : f32 to vector<8x4096xf32>
    %2 = arith.mulf %1, %0 : vector<8x4096xf32>
    %cst_1 = arith.constant 0.707106769 : f32
    %3 = vector.broadcast %cst_1 : f32 to vector<8x4096xf32>
    %4 = arith.mulf %0, %3 : vector<8x4096xf32>
    %5 = math.erf %4 : vector<8x4096xf32>
    %cst_2 = arith.constant 1.000000e+00 : f32
    %6 = vector.broadcast %cst_2 : f32 to vector<8x4096xf32>
    %7 = arith.addf %6, %5 : vector<8x4096xf32>
    %8 = arith.mulf %2, %7 : vector<8x4096xf32>
    %c0_3 = arith.constant 0 : index
    %c0_4 = arith.constant 0 : index
    %9 = vector.load %arg2[%c0_3, %c0_4] : memref<8x4096xf32, #tpu.memory_space<vmem>>, vector<8x4096xf32>
    tpu.vector_store %arg2[%c0_3, %c0_4], %8 {strides = array<i32>} : memref<8x4096xf32, #tpu.memory_space<vmem>>, vector<8x4096xf32>,
    return
  }
  func.func @transform_0(%arg0: i32) -> (i32, i32) {
    %c0_i32 = arith.constant 0 : i32
    %c0_i32_0 = arith.constant 0 : i32
    return %arg0, %c0_i32 : i32, i32
  }
  func.func @transform_1(%arg0: i32) -> (i32, i32) {
    %c0_i32 = arith.constant 0 : i32
    %c0_i32_0 = arith.constant 0 : i32
    return %arg0, %c0_i32 : i32, i32
  }
}

</mosaic_0001>

<llo_original>
// kernel: tpu_custom_call.1
$region0: #{tpu_custom_call.1}
  #allocation0 [shape = 'u32[]', space=smem, size = 0x4, offset = 0x4, fixed_abs, tag = 'smem constant byte address 0x4 - core index']
  #allocation1 [shape = 'u32[144,128]{1,0:T(1,128)}', space=vmem, size = 0x12000, scoped, tag = 'internal scratch']
  %s0 = inlined_call_operand.hbm [shape: f32[32,4096], index: 0, kind: input, shape index: {}]
  %s1 = inlined_call_operand.hbm [shape: f32[32,4096], index: 1, kind: output, shape index: {}]
  %s2 = sld [smem:[#allocation0]]
  $region41: #{tpu_custom_call.1} parent=0
    _
  %s4 = ssub.s32 1, %s2
  %s5 = scalar_select 0, %s4, %s2
  $region1: #{tpu_custom_call.1} parent=0
    #allocation2 [shape = 'u8[262144]{0}', space=vmem, size = 0x40000, scoped, tag = 'input window, operand 0']
    #allocation3 [shape = 's32[2]{0}', space=sflag, size = 0x8, scoped, tag = 'scoped memory for tpu_custom_call.1']
    #allocation4 [shape = 's32[2]{0}', space=sflag, size = 0x8, scoped, tag = 'scoped memory for tpu_custom_call.1']
    #allocation5 [shape = 'u8[262144]{0}', space=vmem, size = 0x40000, scoped, tag = 'output window, operand 0']
    %6 = vsyncpa [#allocation3], 0
    %s7 = scalar_lea.sflag [#allocation3], 1
    %8 = vsyncpa %s7, 0
    %9 = vsyncpa [#allocation4], 0
    %s10 = scalar_lea.sflag [#allocation4], 1
    %11 = vsyncpa %s10, 0
    loop: start=0, step=1, limit=6
    $region2: #{tpu_custom_call.1} parent=1 // loop_pre_header
      _
    $region3: #{tpu_custom_call.1} parent=1 // loop_header
      %s13 = sphi 0, %s17
      %p14 = scmp.ge.s32.totalorder %s13, 6
      %s23 = sphi 0, %s25
      %s26 = sphi 0, %s23
      %s27 = sphi 0, %s26
      %s43 = sphi 0, %s27
      %s49 = sphi 0, %s51
      %s52 = sphi 0, %s49
      %s53 = sphi 0, %s52
      %s69 = sphi 0, %s53
    $region4: #{tpu_custom_call.1} parent=1 // loop_header_branch
      %16 = sbr.rel (%p14) target = $region8
    $region5: #{tpu_custom_call.1} parent=1 // loop_body
      %s18 = ssub.s32 %s13, 1
      %s19 = ssub.s32 %s13, 2
      %s20 = sadd.s32 %s13, 1
      %s21 = ssub.s32 %s13, %s20
      %p22 = scmp.eq.s32.totalorder %s21, 0
      %s24 = sadd.s32 %s23, 1
      %s25 = scalar_select %p22, %s23, %s24
      %p28 = pneg %p22
      %p29 = scmp.eq.s32.totalorder %s13, 3
      %p30 = por %p28, %p29
      %p31 = scmp.ne.s32.totalorder %s23, %s26
      %p32 = scmp.eq.s32.totalorder %s13, 0
      %p33 = por %p31, %p32
      %p34 = scmp.ne.s32.totalorder %s23, %s26
      %p35 = scmp.eq.s32.totalorder %s18, 3
      %p36 = por %p34, %p35
      %p37 = scmp.ne.s32.totalorder %s26, %s27
      %p38 = scmp.eq.s32.totalorder %s18, 0
      %p39 = por %p37, %p38
      %p40 = scmp.ne.s32.totalorder %s26, %s27
      %p41 = scmp.eq.s32.totalorder %s19, 3
      %p42 = por %p40, %p41
      %p44 = scmp.ne.s32.totalorder %s27, %s43
      %p45 = scmp.eq.s32.totalorder %s19, 0
      %p46 = por %p44, %p45
      %s47 = ssub.s32 %s13, %s20
      %p48 = scmp.eq.s32.totalorder %s47, 0
      %s50 = sadd.s32 %s49, 1
      %s51 = scalar_select %p48, %s49, %s50
      %p54 = pneg %p48
      %p55 = scmp.eq.s32.totalorder %s13, 3
      %p56 = por %p54, %p55
      %p57 = scmp.ne.s32.totalorder %s49, %s52
      %p58 = scmp.eq.s32.totalorder %s13, 0
      %p59 = por %p57, %p58
      %p60 = scmp.ne.s32.totalorder %s49, %s52
      %p61 = scmp.eq.s32.totalorder %s18, 3
      %p62 = por %p60, %p61
      %p63 = scmp.ne.s32.totalorder %s52, %s53
      %p64 = scmp.eq.s32.totalorder %s18, 0
      %p65 = por %p63, %p64
      %p66 = scmp.ne.s32.totalorder %s52, %s53
      %p67 = scmp.eq.s32.totalorder %s19, 3
      %p68 = por %p66, %p67
      %p70 = scmp.ne.s32.totalorder %s53, %s69
      %p71 = scmp.eq.s32.totalorder %s19, 0
      %p72 = por %p70, %p71
      %p73 = scmp.le.s32.totalorder 1, %s13
      %p74 = scmp.lt.s32.totalorder %s13, 5
      %p75 = pnand %p73, %p74
      %p76 = pneg %p75
      // Predicated region
      $region9: #{tpu_custom_call.1} parent=5 // pred_check
        _
      $region10: #{tpu_custom_call.1} parent=5 // pred_check_branch
        %78 = sbr.rel (%p75) target = $region12
      $region11: #{tpu_custom_call.1} parent=5 // pred_region
        %s79 = ssub.s32 %s13, 1
      $region12: #{tpu_custom_call.1} parent=5 // pred_fallthru
        _
      %p80 = scmp.lt.s32.totalorder %s13, 4
      // Predicated region
      $region13: #{tpu_custom_call.1} parent=5 // pred_check
        %p81 = pneg %p80
      $region14: #{tpu_custom_call.1} parent=5 // pred_check_branch
        %83 = sbr.rel (%p81) target = $region16
      $region15: #{tpu_custom_call.1} parent=5 // pred_region
        // Predicated region
        $region17: #{tpu_custom_call.1} parent=15 // pred_check
          %p84 = pneg %p33
        $region18: #{tpu_custom_call.1} parent=15 // pred_check_branch
          %86 = sbr.rel (%p84) target = $region20
        $region19: #{tpu_custom_call.1} parent=15 // pred_region
          %s87 = sand.u32 %s23, 1
          %s88 = scalar_lea.sflag [#allocation3], %s87
          %s89 = sand.u32 %s23, 1
          %s90 = smul.addr %s89, 256
          %s91 = scalar_lea.vmem [#allocation2], %s90
          %s93 = ssub.s32 4096, 4096
          %94 = vsyncadd %s88, %s93
          %s95 = smul.addr %s13, 32
          %s96 = smul.addr %s95, 128
          %s97 = scalar_lea.hbm %s0, %s96
          %s99 = sshll.u32 %s91, 4
          %s100 = int_to_ptr.vmem [resolvable:$true] %s99
          %102 = dma.hbm_to_vmem [thread:$0]  %s97, 4096, %s100, %s88
        $region20: #{tpu_custom_call.1} parent=15 // pred_fallthru
          _
      $region16: #{tpu_custom_call.1} parent=5 // pred_fallthru
        _
      %p103 = scmp.le.s32.totalorder 1, %s13
      %p104 = scmp.lt.s32.totalorder %s13, 5
      %p105 = pnand %p103, %p104
      %p106 = pneg %p105
      // Predicated region
      $region21: #{tpu_custom_call.1} parent=5 // pred_check
        _
      $region22: #{tpu_custom_call.1} parent=5 // pred_check_branch
        %108 = sbr.rel (%p105) target = $region24
      $region23: #{tpu_custom_call.1} parent=5 // pred_region
        %s109 = ssub.s32 %s13, 1
        %s110 = sand.u32 %s26, 1
        %s111 = scalar_lea.sflag [#allocation3], %s110
        %s112 = sand.u32 %s26, 1
        %s113 = smul.addr %s112, 256
        %s114 = scalar_lea.vmem [#allocation2], %s113
        // Predicated region
        $region25: #{tpu_custom_call.1} parent=23 // pred_check
          %p115 = pneg %p39
        $region26: #{tpu_custom_call.1} parent=23 // pred_check_branch
          %117 = sbr.rel (%p115) target = $region28
        $region27: #{tpu_custom_call.1} parent=23 // pred_region
          %118 = dma.done %s111, 4096
        $region28: #{tpu_custom_call.1} parent=23 // pred_fallthru
          _
        %s119 = sand.u32 %s26, 1
        %s120 = scalar_lea.sflag [#allocation3], %s119
        %s121 = sand.u32 %s26, 1
        %s122 = smul.addr %s121, 256
        %s123 = scalar_lea.vmem [#allocation2], %s122
        %p124 = pneg %p39
        %p125 = pneg %p36
        %p126 = pneg %p65
        %p127 = pneg %p62
        %s128 = sand.u32 %s52, 1
        %s129 = scalar_lea.sflag [#allocation4], %s128
        %s130 = sand.u32 %s52, 1
        %s131 = smul.addr %s130, 256
        %s132 = scalar_lea.vmem [#allocation5], %s131
        %v133 = vld [vmem:[%s114] sm:$0xff]
        %v134 = vld [vmem:[%s114 + $0x8] sm:$0xff]
        %v135 = vld [vmem:[%s114 + $0x10] sm:$0xff]
        %v136 = vld [vmem:[%s114 + $0x18] sm:$0xff]
        %v137 = vld [vmem:[%s114 + $0x20] sm:$0xff]
        %v138 = vld [vmem:[%s114 + $0x28] sm:$0xff]
        %v139 = vld [vmem:[%s114 + $0x30] sm:$0xff]
        %v140 = vld [vmem:[%s114 + $0x38] sm:$0xff]
        %v141 = vld [vmem:[%s114 + $0x40] sm:$0xff]
        %v142 = vld [vmem:[%s114 + $0x48] sm:$0xff]
        %v143 = vld [vmem:[%s114 + $0x50] sm:$0xff]
        %v144 = vld [vmem:[%s114 + $0x58] sm:$0xff]
        %v145 = vld [vmem:[%s114 + $0x60] sm:$0xff]
        %v146 = vld [vmem:[%s114 + $0x68] sm:$0xff]
        %v147 = vld [vmem:[%s114 + $0x70] sm:$0xff]
        %v148 = vld [vmem:[%s114 + $0x78] sm:$0xff]
        %v149 = vld [vmem:[%s114 + $0x80] sm:$0xff]
        %v150 = vld [vmem:[%s114 + $0x88] sm:$0xff]
        %v151 = vld [vmem:[%s114 + $0x90] sm:$0xff]
        %v152 = vld [vmem:[%s114 + $0x98] sm:$0xff]
        %v153 = vld [vmem:[%s114 + $0xa0] sm:$0xff]
        %v154 = vld [vmem:[%s114 + $0xa8] sm:$0xff]
        %v155 = vld [vmem:[%s114 + $0xb0] sm:$0xff]
        %v156 = vld [vmem:[%s114 + $0xb8] sm:$0xff]
        %v157 = vld [vmem:[%s114 + $0xc0] sm:$0xff]
        %v158 = vld [vmem:[%s114 + $0xc8] sm:$0xff]
        %v159 = vld [vmem:[%s114 + $0xd0] sm:$0xff]
        %v160 = vld [vmem:[%s114 + $0xd8] sm:$0xff]
        %v161 = vld [vmem:[%s114 + $0xe0] sm:$0xff]
        %v162 = vld [vmem:[%s114 + $0xe8] sm:$0xff]
        %v163 = vld [vmem:[%s114 + $0xf0] sm:$0xff]
        %v164 = vld [vmem:[%s114 + $0xf8] sm:$0xff]
        %v165 = vmul.f32 %v133, 0.5
        %v166 = vmul.f32 %v134, 0.5
        %v167 = vmul.f32 %v135, 0.5
        %v168 = vmul.f32 %v136, 0.5
        %v169 = vmul.f32 %v137, 0.5
        %v170 = vmul.f32 %v138, 0.5
        %v171 = vmul.f32 %v139, 0.5
        %v172 = vmul.f32 %v140, 0.5
        %v173 = vmul.f32 %v141, 0.5
        %v174 = vmul.f32 %v142, 0.5
        %v175 = vmul.f32 %v143, 0.5
        %v176 = vmul.f32 %v144, 0.5
        %v177 = vmul.f32 %v145, 0.5
        %v178 = vmul.f32 %v146, 0.5
        %v179 = vmul.f32 %v147, 0.5
        %v180 = vmul.f32 %v148, 0.5
        %v181 = vmul.f32 %v149, 0.5
        %v182 = vmul.f32 %v150, 0.5
        %v183 = vmul.f32 %v151, 0.5
        %v184 = vmul.f32 %v152, 0.5
        %v185 = vmul.f32 %v153, 0.5
        %v186 = vmul.f32 %v154, 0.5
        %v187 = vmul.f32 %v155, 0.5
        %v188 = vmul.f32 %v156, 0.5
        %v189 = vmul.f32 %v157, 0.5
        %v190 = vmul.f32 %v158, 0.5
        %v191 = vmul.f32 %v159, 0.5
        %v192 = vmul.f32 %v160, 0.5
        %v193 = vmul.f32 %v161, 0.5
        %v194 = vmul.f32 %v162, 0.5
        %v195 = vmul.f32 %v163, 0.5
        %v196 = vmul.f32 %v164, 0.5
        %v197 = vmul.f32 %v133, 0.70710677
        %v198 = vmul.f32 %v134, 0.70710677
        %v199 = vmul.f32 %v135, 0.70710677
        %v200 = vmul.f32 %v136, 0.70710677
        %v201 = vmul.f32 %v137, 0.70710677
        %v202 = vmul.f32 %v138, 0.70710677
        %v203 = vmul.f32 %v139, 0.70710677
        %v204 = vmul.f32 %v140, 0.70710677
        %v205 = vmul.f32 %v141, 0.70710677
        %v206 = vmul.f32 %v142, 0.70710677
        %v207 = vmul.f32 %v143, 0.70710677
        %v208 = vmul.f32 %v144, 0.70710677
        %v209 = vmul.f32 %v145, 0.70710677
        %v210 = vmul.f32 %v146, 0.70710677
        %v211 = vmul.f32 %v147, 0.70710677
        %v212 = vmul.f32 %v148, 0.70710677
        %v213 = vmul.f32 %v149, 0.70710677
        %v214 = vmul.f32 %v150, 0.70710677
        %v215 = vmul.f32 %v151, 0.70710677
        %v216 = vmul.f32 %v152, 0.70710677
        %v217 = vmul.f32 %v153, 0.70710677
        %v218 = vmul.f32 %v154, 0.70710677
        %v219 = vmul.f32 %v155, 0.70710677
        %v220 = vmul.f32 %v156, 0.70710677
        %v221 = vmul.f32 %v157, 0.70710677
        %v222 = vmul.f32 %v158, 0.70710677
        %v223 = vmul.f32 %v159, 0.70710677
        %v224 = vmul.f32 %v160, 0.70710677
        %v225 = vmul.f32 %v161, 0.70710677
        %v226 = vmul.f32 %v162, 0.70710677
        %v227 = vmul.f32 %v163, 0.70710677
        %v228 = vmul.f32 %v164, 0.70710677
        %v229 = verf.f32.pop %v197
        %v230 = verf.f32.pop %v198
        %v231 = verf.f32.pop %v199
        %v232 = verf.f32.pop %v200
        %v233 = verf.f32.pop %v201
        %v234 = verf.f32.pop %v202
        %v235 = verf.f32.pop %v203
        %v236 = verf.f32.pop %v204
        %v237 = verf.f32.pop %v205
        %v238 = verf.f32.pop %v206
        %v239 = verf.f32.pop %v207
        %v240 = verf.f32.pop %v208
        %v241 = verf.f32.pop %v209
        %v242 = verf.f32.pop %v210
        %v243 = verf.f32.pop %v211
        %v244 = verf.f32.pop %v212
        %v245 = verf.f32.pop %v213
        %v246 = verf.f32.pop %v214
        %v247 = verf.f32.pop %v215
        %v248 = verf.f32.pop %v216
        %v249 = verf.f32.pop %v217
        %v250 = verf.f32.pop %v218
        %v251 = verf.f32.pop %v219
        %v252 = verf.f32.pop %v220
        %v253 = verf.f32.pop %v221
        %v254 = verf.f32.pop %v222
        %v255 = verf.f32.pop %v223
        %v256 = verf.f32.pop %v224
        %v257 = verf.f32.pop %v225
        %v258 = verf.f32.pop %v226
        %v259 = verf.f32.pop %v227
        %v260 = verf.f32.pop %v228
        %v261 = vadd.f32 %v229, 1.0
        %v262 = vadd.f32 %v230, 1.0
        %v263 = vadd.f32 %v231, 1.0
        %v264 = vadd.f32 %v232, 1.0
        %v265 = vadd.f32 %v233, 1.0
        %v266 = vadd.f32 %v234, 1.0
        %v267 = vadd.f32 %v235, 1.0
        %v268 = vadd.f32 %v236, 1.0
        %v269 = vadd.f32 %v237, 1.0
        %v270 = vadd.f32 %v238, 1.0
        %v271 = vadd.f32 %v239, 1.0
        %v272 = vadd.f32 %v240, 1.0
        %v273 = vadd.f32 %v241, 1.0
        %v274 = vadd.f32 %v242, 1.0
        %v275 = vadd.f32 %v243, 1.0
        %v276 = vadd.f32 %v244, 1.0
        %v277 = vadd.f32 %v245, 1.0
        %v278 = vadd.f32 %v246, 1.0
        %v279 = vadd.f32 %v247, 1.0
        %v280 = vadd.f32 %v248, 1.0
        %v281 = vadd.f32 %v249, 1.0
        %v282 = vadd.f32 %v250, 1.0
        %v283 = vadd.f32 %v251, 1.0
        %v284 = vadd.f32 %v252, 1.0
        %v285 = vadd.f32 %v253, 1.0
        %v286 = vadd.f32 %v254, 1.0
        %v287 = vadd.f32 %v255, 1.0
        %v288 = vadd.f32 %v256, 1.0
        %v289 = vadd.f32 %v257, 1.0
        %v290 = vadd.f32 %v258, 1.0
        %v291 = vadd.f32 %v259, 1.0
        %v292 = vadd.f32 %v260, 1.0
        %v293 = vmul.f32 %v165, %v261
        %v294 = vmul.f32 %v166, %v262
        %v295 = vmul.f32 %v167, %v263
        %v296 = vmul.f32 %v168, %v264
        %v297 = vmul.f32 %v169, %v265
        %v298 = vmul.f32 %v170, %v266
        %v299 = vmul.f32 %v171, %v267
        %v300 = vmul.f32 %v172, %v268
        %v301 = vmul.f32 %v173, %v269
        %v302 = vmul.f32 %v174, %v270
        %v303 = vmul.f32 %v175, %v271
        %v304 = vmul.f32 %v176, %v272
        %v305 = vmul.f32 %v177, %v273
        %v306 = vmul.f32 %v178, %v274
        %v307 = vmul.f32 %v179, %v275
        %v308 = vmul.f32 %v180, %v276
        %v309 = vmul.f32 %v181, %v277
        %v310 = vmul.f32 %v182, %v278
        %v311 = vmul.f32 %v183, %v279
        %v312 = vmul.f32 %v184, %v280
        %v313 = vmul.f32 %v185, %v281
        %v314 = vmul.f32 %v186, %v282
        %v315 = vmul.f32 %v187, %v283
        %v316 = vmul.f32 %v188, %v284
        %v317 = vmul.f32 %v189, %v285
        %v318 = vmul.f32 %v190, %v286
        %v319 = vmul.f32 %v191, %v287
        %v320 = vmul.f32 %v192, %v288
        %v321 = vmul.f32 %v193, %v289
        %v322 = vmul.f32 %v194, %v290
        %v323 = vmul.f32 %v195, %v291
        %v324 = vmul.f32 %v196, %v292
        %325 = vst [vmem:[%s132] sm:$0xff] %v293
        %326 = vst [vmem:[%s132 + $0x8] sm:$0xff] %v294
        %327 = vst [vmem:[%s132 + $0x10] sm:$0xff] %v295
        %328 = vst [vmem:[%s132 + $0x18] sm:$0xff] %v296
        %329 = vst [vmem:[%s132 + $0x20] sm:$0xff] %v297
        %330 = vst [vmem:[%s132 + $0x28] sm:$0xff] %v298
        %331 = vst [vmem:[%s132 + $0x30] sm:$0xff] %v299
        %332 = vst [vmem:[%s132 + $0x38] sm:$0xff] %v300
        %333 = vst [vmem:[%s132 + $0x40] sm:$0xff] %v301
        %334 = vst [vmem:[%s132 + $0x48] sm:$0xff] %v302
        %335 = vst [vmem:[%s132 + $0x50] sm:$0xff] %v303
        %336 = vst [vmem:[%s132 + $0x58] sm:$0xff] %v304
        %337 = vst [vmem:[%s132 + $0x60] sm:$0xff] %v305
        %338 = vst [vmem:[%s132 + $0x68] sm:$0xff] %v306
        %339 = vst [vmem:[%s132 + $0x70] sm:$0xff] %v307
        %340 = vst [vmem:[%s132 + $0x78] sm:$0xff] %v308
        %341 = vst [vmem:[%s132 + $0x80] sm:$0xff] %v309
        %342 = vst [vmem:[%s132 + $0x88] sm:$0xff] %v310
        %343 = vst [vmem:[%s132 + $0x90] sm:$0xff] %v311
        %344 = vst [vmem:[%s132 + $0x98] sm:$0xff] %v312
        %345 = vst [vmem:[%s132 + $0xa0] sm:$0xff] %v313
        %346 = vst [vmem:[%s132 + $0xa8] sm:$0xff] %v314
        %347 = vst [vmem:[%s132 + $0xb0] sm:$0xff] %v315
        %348 = vst [vmem:[%s132 + $0xb8] sm:$0xff] %v316
        %349 = vst [vmem:[%s132 + $0xc0] sm:$0xff] %v317
        %350 = vst [vmem:[%s132 + $0xc8] sm:$0xff] %v318
        %351 = vst [vmem:[%s132 + $0xd0] sm:$0xff] %v319
        %352 = vst [vmem:[%s132 + $0xd8] sm:$0xff] %v320
        %353 = vst [vmem:[%s132 + $0xe0] sm:$0xff] %v321
        %354 = vst [vmem:[%s132 + $0xe8] sm:$0xff] %v322
        %355 = vst [vmem:[%s132 + $0xf0] sm:$0xff] %v323
        %356 = vst [vmem:[%s132 + $0xf8] sm:$0xff] %v324
        %s357 = sand.u32 %s52, 1
        %s358 = scalar_lea.sflag [#allocation4], %s357
        %s359 = sand.u32 %s52, 1
        %s360 = smul.addr %s359, 256
        %s361 = scalar_lea.vmem [#allocation5], %s360
        // Predicated region
        $region29: #{tpu_custom_call.1} parent=23 // pred_check
          %p362 = pneg %p62
        $region30: #{tpu_custom_call.1} parent=23 // pred_check_branch
          %364 = sbr.rel (%p362) target = $region32
        $region31: #{tpu_custom_call.1} parent=23 // pred_region
          %s366 = ssub.s32 4096, 4096
          %367 = vsyncadd %s358, %s366
          %s368 = smul.addr %s18, 32
          %s369 = smul.addr %s368, 128
          %s370 = scalar_lea.hbm %s1, %s369
          %s372 = sshll.u32 %s361, 4
          %s373 = int_to_ptr.vmem [resolvable:$true] %s372
          %375 = dma.vmem_to_hbm [thread:$0]  %s373, 4096, %s370, %s358
        $region32: #{tpu_custom_call.1} parent=23 // pred_fallthru
          _
      $region24: #{tpu_custom_call.1} parent=5 // pred_fallthru
        _
      %p376 = scmp.le.s32.totalorder 2, %s13
      // Predicated region
      $region33: #{tpu_custom_call.1} parent=5 // pred_check
        %p377 = pneg %p376
      $region34: #{tpu_custom_call.1} parent=5 // pred_check_branch
        %379 = sbr.rel (%p377) target = $region36
      $region35: #{tpu_custom_call.1} parent=5 // pred_region
        %s380 = ssub.s32 %s13, 2
        // Predicated region
        $region37: #{tpu_custom_call.1} parent=35 // pred_check
          %p381 = pneg %p68
        $region38: #{tpu_custom_call.1} parent=35 // pred_check_branch
          %383 = sbr.rel (%p381) target = $region40
        $region39: #{tpu_custom_call.1} parent=35 // pred_region
          %s384 = sand.u32 %s53, 1
          %s385 = scalar_lea.sflag [#allocation4], %s384
          %s386 = sand.u32 %s53, 1
          %s387 = smul.addr %s386, 256
          %s388 = scalar_lea.vmem [#allocation5], %s387
          %389 = dma.done %s385, 4096
        $region40: #{tpu_custom_call.1} parent=35 // pred_fallthru
          _
      $region36: #{tpu_custom_call.1} parent=5 // pred_fallthru
        _
    $region6: #{tpu_custom_call.1} parent=1 // loop_footer
      %s17 = sadd.s32 1, %s13
    $region7: #{tpu_custom_call.1} parent=1 // loop_footer_branch
      %12 = sbr.rel target = $region3
    $region8: #{tpu_custom_call.1} parent=1 // loop_exit
      _
    %390 = vsyncpa [#allocation3], 1
    %s391 = scalar_lea.sflag [#allocation3], 1
    %392 = vsyncpa %s391, 1
    %393 = vsyncpa [#allocation4], 1
    %s394 = scalar_lea.sflag [#allocation4], 1
    %395 = vsyncpa %s394, 1

</llo_original>
